<compile_context>
chip_gen: v7x
topology: tpu7x:2x2x1
jax: 0.10.0
libtpu: 0.0.40
codegen_flags: <defaults>
</compile_context>

<pallas_src>
import functools

import jax
import jax.numpy as jnp
from jax import lax
from jax.experimental import pallas as pl
from jax.experimental.pallas import tpu as pltpu


def _round_up(x, m):
    return ((x + m - 1) // m) * m


def _block_footprint(nc_tile, h, w, itemsize):
    """(HBM bytes of one input block, est. VMEM footprint of one grid step)."""
    sub_in = max(8, 32 // max(itemsize, 1))   # sublane pack: f32->8, bf16->16, i8->32
    wpad = _round_up(w, 128)
    blk_in = nc_tile * _round_up(h, sub_in) * wpad * itemsize
    blk_f32 = nc_tile * _round_up(h, 8) * wpad * 4
    # 2 inputs x 2 pipeline buffers, plus ~5 block-sized f32 temporaries the
    # compiler may materialize for d / lap / one shifted copy (+ slack).
    return blk_in, 4 * blk_in + 5 * blk_f32


def _grad_loss_kernel(x1_ref, x2_ref, out_ref, *, H, W, n_blocks, k_per_par,
                      guard_tail):
    """One (nc_tile, H, W) slab of both images.

    x1_ref/x2_ref : (nc_tile, H, W) inputs in their original dtype.
    out_ref       : (1, 8, 128) lane-dense partial-sum block, resident across
                    the reduction (k) axis; every element holds the same sum.
    """
    p = pl.program_id(0)
    k = pl.program_id(1)

    @pl.when(k == 0)
    def _init():
        out_ref[...] = jnp.zeros_like(out_ref)

    def _accumulate():
        # Laplacian is linear: lap(x1) - lap(x2) == lap(x1 - x2) -> one pass.
        # Upcast in-kernel so the HBM DMA stays in the input dtype.
        d = x1_ref[...].astype(jnp.float32) - x2_ref[...].astype(jnp.float32)
        nct = d.shape[0]
        # Zero-padded 3x3 stencil built from shifted in-register copies of d
        # (no halo scratch, no unaligned VMEM reloads). Summed serially to
        # keep at most ~3 block-sized f32 temporaries live.
        lap = -4.0 * d
        if H > 1:
            zrow = jnp.zeros((nct, 1, W), jnp.float32)
            lap = lap + jnp.concatenate([zrow, d[:, :H - 1, :]], axis=1)  # d[h-1]
            lap = lap + jnp.concatenate([d[:, 1:, :], zrow], axis=1)      # d[h+1]
        if W > 1:
            zcol = jnp.zeros((nct, H, 1), jnp.float32)
            lap = lap + jnp.concatenate([zcol, d[:, :, :W - 1]], axis=2)  # d[w-1]
            lap = lap + jnp.concatenate([d[:, :, 1:], zcol], axis=2)      # d[w+1]
        # |x^2| == x^2: the reference's abs() is a no-op.
        out_ref[...] += jnp.sum(lap * lap)

    if guard_tail:
        # Odd block count split across 2 parallel slices: the clamped tail
        # step re-reads a valid block but contributes nothing.
        pl.when(p * k_per_par + k < n_blocks)(_accumulate)
    else:
        _accumulate()


def grad_loss(img1, img2, *, target_block_bytes=4 << 20,
              vmem_budget_bytes=36 << 20):
    """GradLoss.forward: mean((lap(img1) - lap(img2))^2) for NCHW inputs."""
    assert img1.shape == img2.shape
    b, c, h, w = img1.shape
    nc = b * c
    # Depthwise conv with one shared 3x3 kernel -> N and C collapse (free).
    x1 = img1.reshape(nc, h, w)
    x2 = img2.reshape(nc, h, w)
    itemsize = jnp.dtype(img1.dtype).itemsize

    # Largest divisor of N*C whose block stays under both the per-step HBM
    # target (~4 MiB/input keeps the ~0.35us fixed grid-step cost <10% of the
    # DMA on every generation) and the estimated VMEM footprint budget.
    nc_tile = 1
    for t in range(1, nc + 1):
        if nc % t:
            continue
        blk_in, foot = _block_footprint(t, h, w, itemsize)
        if blk_in <= target_block_bytes and foot <= vmem_budget_bytes:
            nc_tile = t
    # TODO(synk): a single (H, W) slice too large for the VMEM budget would
    # additionally need H tiling with an overlapping halo; not needed here.

    n_blocks = nc // nc_tile
    # Always engage a 2nd TensorCore (v7x) when there is more than one block;
    # an odd tail is clamped in the index_map and skipped in-kernel.
    n_par = 2 if n_blocks >= 2 else 1
    k_per_par = pl.cdiv(n_blocks, n_par)
    guard_tail = (n_par * k_per_par != n_blocks)

    if guard_tail:
        def in_idx(p, k):
            return (jnp.minimum(p * k_per_par + k, n_blocks - 1), 0, 0)
    else:
        def in_idx(p, k):
            return (p * k_per_par + k, 0, 0)

    _, foot = _block_footprint(nc_tile, h, w, itemsize)
    # Derived from the real footprint; capped so it fits v7x's 64 MiB physical
    # VMEM (v5e/v6e have 128 MiB, so the cap costs nothing there).
    vmem_limit = int(min(max(foot + (4 << 20), 16 << 20), 48 << 20))

    kernel = functools.partial(
        _grad_loss_kernel, H=h, W=w, n_blocks=n_blocks, k_per_par=k_per_par,
        guard_tail=guard_tail)

    cost = pl.CostEstimate(
        flops=int(8 * nc * h * w),
        transcendentals=0,
        bytes_accessed=int(2 * nc * h * w * itemsize + n_par * 8 * 128 * 4))

    partials = pl.pallas_call(
        kernel,
        out_shape=jax.ShapeDtypeStruct((n_par, 8, 128), jnp.float32),
        grid=(n_par, k_per_par),
        in_specs=[
            pl.BlockSpec((nc_tile, h, w), in_idx),
            pl.BlockSpec((nc_tile, h, w), in_idx),
        ],
        out_specs=pl.BlockSpec((1, 8, 128), lambda p, k: (p, 0, 0)),
        compiler_params=pltpu.CompilerParams(
            dimension_semantics=("parallel", "arbitrary"),
            vmem_limit_bytes=vmem_limit),
        cost_estimate=cost,
    )(x1, x2)

    total = jnp.sum(partials[:, 0, 0])
    return total / jnp.float32(nc * h * w)


def _grad_loss_reference(img1, img2):
    """Independent plain-JAX reference (depthwise lax conv, NCHW)."""
    b, c, h, w = img1.shape
    k = jnp.array([[0., 1., 0.], [1., -4., 1.], [0., 1., 0.]], jnp.float32)
    weight = jnp.broadcast_to(k, (c, 1, 3, 3))

    def conv(x):
        return lax.conv_general_dilated(
            x.astype(jnp.float32), weight,
            window_strides=(1, 1), padding=((1, 1), (1, 1)),
            dimension_numbers=("NCHW", "OIHW", "NCHW"),
            feature_group_count=c)

    d = conv(img1) - conv(img2)
    return jnp.mean(jnp.abs(d ** 2))


if __name__ == "__main__":
    key = jax.random.PRNGKey(0)
    k1, k2, k3, k4 = jax.random.split(key, 4)

    B, C, H, W = 2, 4, 16, 16
    img1 = jax.random.normal(k1, (B, C, H, W), dtype=jnp.float32)
    img2 = jax.random.normal(k2, (B, C, H, W), dtype=jnp.float32)
    ref = _grad_loss_reference(img1, img2)

    # 1) Default tiling: whole N*C axis in one block -> grid (1, 1).
    loss = jax.block_until_ready(jax.jit(grad_loss)(img1, img2))
    assert jnp.allclose(loss, ref, rtol=1e-5, atol=1e-5), (loss, ref)

    # 2) Small tile budget -> nc_tile=2, 4 blocks split 2x2 (even parallel
    #    split + multi-step accumulation path).
    tiled_fn = jax.jit(functools.partial(grad_loss, target_block_bytes=16 * 1024))
    loss_t = jax.block_until_ready(tiled_fn(img1, img2))
    assert jnp.allclose(loss_t, ref, rtol=1e-5, atol=1e-5), (loss_t, ref)

    # 3) Odd block count (nc=3, nc_tile=1 -> 3 blocks over a (2, 2) grid):
    #    exercises the clamped index_map + pl.when tail guard.
    img3 = jax.random.normal(k3, (1, 3, 16, 16), dtype=jnp.float32)
    img4 = jax.random.normal(k4, (1, 3, 16, 16), dtype=jnp.float32)
    ref_o = _grad_loss_reference(img3, img4)
    odd_fn = jax.jit(functools.partial(grad_loss, target_block_bytes=8 * 1024))
    loss_o = jax.block_until_ready(odd_fn(img3, img4))
    assert jnp.allclose(loss_o, ref_o, rtol=1e-5, atol=1e-5), (loss_o, ref_o)

    print("KERNEL_OK")
</pallas_src>

<mosaic_0001>
module attributes {stable_mosaic.version = 11 : i64} {
  func.func @_grad_loss_kernel(%arg0: i32, %arg1: i32, %arg2: memref<8x16x16xf32, #tpu.memory_space<vmem>>, %arg3: memref<8x16x16xf32, #tpu.memory_space<vmem>>, %arg4: memref<1x8x128xf32, #tpu.memory_space<vmem>>) attributes {dimension_semantics = [#tpu.dimension_semantics<parallel>, #tpu.dimension_semantics<arbitrary>], iteration_bounds = array<i64: 1, 1>, scalar_prefetch = 0 : i64, scratch_operands = 0 : i64, tpu.core_type = #tpu.core_type<tc>, window_params = [{transform_indices = @transform_0, window_bounds = array<i64: 8, 16, 16>}, {transform_indices = @transform_1, window_bounds = array<i64: 8, 16, 16>}, {transform_indices = @transform_2, window_bounds = array<i64: 1, 8, 128>}]} {
    %c0_i32 = arith.constant 0 : i32
    %0 = arith.cmpi eq, %arg1, %c0_i32 : i32
    %1 = arith.extui %0 : i1 to i32
    %c0_i32_0 = arith.constant 0 : i32
    %2 = arith.cmpi ne, %1, %c0_i32_0 : i32
    scf.if %2 {
      %cst_15 = arith.constant 0.000000e+00 : f32
      %31 = vector.broadcast %cst_15 : f32 to vector<1x8x128xf32>
      %c0_16 = arith.constant 0 : index
      %c0_17 = arith.constant 0 : index
      %c0_18 = arith.constant 0 : index
      %32 = vector.load %arg4[%c0_16, %c0_17, %c0_18] : memref<1x8x128xf32, #tpu.memory_space<vmem>>, vector<1x8x128xf32>
      tpu.vector_store %arg4[%c0_16, %c0_17, %c0_18], %31 {strides = array<i32>} : memref<1x8x128xf32, #tpu.memory_space<vmem>>, vector<1x8x128xf32>,
    } else {
    }
    %c0 = arith.constant 0 : index
    %c0_1 = arith.constant 0 : index
    %c0_2 = arith.constant 0 : index
    %3 = vector.load %arg2[%c0, %c0_1, %c0_2] : memref<8x16x16xf32, #tpu.memory_space<vmem>>, vector<8x16x16xf32>
    %c0_3 = arith.constant 0 : index
    %c0_4 = arith.constant 0 : index
    %c0_5 = arith.constant 0 : index
    %4 = vector.load %arg3[%c0_3, %c0_4, %c0_5] : memref<8x16x16xf32, #tpu.memory_space<vmem>>, vector<8x16x16xf32>
    %5 = arith.subf %3, %4 : vector<8x16x16xf32>
    %cst = arith.constant -4.000000e+00 : f32
    %6 = vector.broadcast %cst : f32 to vector<8x16x16xf32>
    %7 = arith.mulf %6, %5 : vector<8x16x16xf32>
    %cst_6 = arith.constant 0.000000e+00 : f32
    %8 = vector.broadcast %cst_6 : f32 to vector<8x1x16xf32>
    %9 = vector.extract_strided_slice %5 {offsets = [0, 0, 0], sizes = [8, 15, 16], strides = [1, 1, 1]} : vector<8x16x16xf32> to vector<8x15x16xf32>
    %10 = tpu.concatenate %8, %9 in 1 : vector<8x1x16xf32>, vector<8x15x16xf32> -> vector<8x16x16xf32>
    %11 = arith.addf %7, %10 : vector<8x16x16xf32>
    %12 = vector.extract_strided_slice %5 {offsets = [0, 1, 0], sizes = [8, 15, 16], strides = [1, 1, 1]} : vector<8x16x16xf32> to vector<8x15x16xf32>
    %13 = tpu.concatenate %12, %8 in 1 : vector<8x15x16xf32>, vector<8x1x16xf32> -> vector<8x16x16xf32>
    %14 = arith.addf %11, %13 : vector<8x16x16xf32>
    %cst_7 = arith.constant 0.000000e+00 : f32
    %15 = vector.broadcast %cst_7 : f32 to vector<8x16x1xf32>
    %16 = vector.extract_strided_slice %5 {offsets = [0, 0, 0], sizes = [8, 16, 15], strides = [1, 1, 1]} : vector<8x16x16xf32> to vector<8x16x15xf32>
    %17 = tpu.concatenate %15, %16 in 2 : vector<8x16x1xf32>, vector<8x16x15xf32> -> vector<8x16x16xf32>
    %18 = arith.addf %14, %17 : vector<8x16x16xf32>
    %19 = vector.extract_strided_slice %5 {offsets = [0, 0, 1], sizes = [8, 16, 15], strides = [1, 1, 1]} : vector<8x16x16xf32> to vector<8x16x15xf32>
    %20 = tpu.concatenate %19, %15 in 2 : vector<8x16x15xf32>, vector<8x16x1xf32> -> vector<8x16x16xf32>
    %21 = arith.addf %18, %20 : vector<8x16x16xf32>
    %c0_8 = arith.constant 0 : index
    %c0_9 = arith.constant 0 : index
    %c0_10 = arith.constant 0 : index
    %22 = vector.load %arg4[%c0_8, %c0_9, %c0_10] : memref<1x8x128xf32, #tpu.memory_space<vmem>>, vector<1x8x128xf32>
    %23 = arith.mulf %21, %21 : vector<8x16x16xf32>
    %24 = vector.shape_cast %23 : vector<8x16x16xf32> to vector<1x8x16x16xf32>
    %cst_11 = arith.constant dense<0.000000e+00> : vector<1xf32>
    %25 = vector.multi_reduction <add>, %24, %cst_11 [1, 2, 3] : vector<1x8x16x16xf32> to vector<1xf32>
    %26 = vector.shape_cast %25 : vector<1xf32> to vector<1x1x1x1xf32>
    %27 = vector.extract %26[0, 0, 0, 0] : f32 from vector<1x1x1x1xf32>
    %28 = vector.broadcast %27 : f32 to vector<1x8x128xf32>
    %29 = arith.addf %22, %28 : vector<1x8x128xf32>
    %c0_12 = arith.constant 0 : index
    %c0_13 = arith.constant 0 : index
    %c0_14 = arith.constant 0 : index
    %30 = vector.load %arg4[%c0_12, %c0_13, %c0_14] : memref<1x8x128xf32, #tpu.memory_space<vmem>>, vector<1x8x128xf32>
    tpu.vector_store %arg4[%c0_12, %c0_13, %c0_14], %29 {strides = array<i32>} : memref<1x8x128xf32, #tpu.memory_space<vmem>>, vector<1x8x128xf32>,
    return
  }
  func.func @transform_0(%arg0: i32, %arg1: i32) -> (i32, i32, i32) {
    %c1_i32 = arith.constant 1 : i32
    %0 = arith.muli %arg0, %c1_i32 : i32
    %1 = arith.addi %0, %arg1 : i32
    %c0_i32 = arith.constant 0 : i32
    %c0_i32_0 = arith.constant 0 : i32
    %c0_i32_1 = arith.constant 0 : i32
    return %1, %c0_i32, %c0_i32_0 : i32, i32, i32
  }
  func.func @transform_1(%arg0: i32, %arg1: i32) -> (i32, i32, i32) {
    %c1_i32 = arith.constant 1 : i32
    %0 = arith.muli %arg0, %c1_i32 : i32
    %1 = arith.addi %0, %arg1 : i32
    %c0_i32 = arith.constant 0 : i32
    %c0_i32_0 = arith.constant 0 : i32
    %c0_i32_1 = arith.constant 0 : i32
    return %1, %c0_i32, %c0_i32_0 : i32, i32, i32
  }
  func.func @transform_2(%arg0: i32, %arg1: i32) -> (i32, i32, i32) {
    %c0_i32 = arith.constant 0 : i32
    %c0_i32_0 = arith.constant 0 : i32
    %c0_i32_1 = arith.constant 0 : i32
    return %arg0, %c0_i32, %c0_i32_0 : i32, i32, i32
  }
}

</mosaic_0001>

<llo_original>
// kernel: grad_loss.1
$region0: #{grad_loss.1}
  #allocation0 [shape = 'u32[]', space=smem, size = 0x4, offset = 0x4, fixed_abs, tag = 'smem constant byte address 0x4 - core index']
  #allocation1 [shape = 'u32[144,128]{1,0:T(1,128)}', space=vmem, size = 0x12000, scoped, tag = 'internal scratch']
  %s0 = inlined_call_operand.hbm [shape: f32[8,16,16], index: 0, kind: input, shape index: {}]
  %s1 = inlined_call_operand.hbm [shape: f32[8,16,16], index: 1, kind: input, shape index: {}]
  %s2 = inlined_call_operand.vmem [shape: f32[1,8,128], index: 2, kind: output, shape index: {}]
  %s3 = sld [smem:[#allocation0]]
  $region30: #{grad_loss.1} parent=0
    _
  %s5 = ssub.s32 1, %s3
  %s6 = scalar_select 0, %s5, %s3
  $region1: #{grad_loss.1} parent=0
    #allocation2 [shape = 'u8[65536]{0}', space=vmem, size = 0x10000, scoped, tag = 'input window, operand 0, single buffered']
    #allocation3 [shape = 's32[1]{0}', space=sflag, size = 0x4, scoped, tag = 'scoped memory for grad_loss.1']
    #allocation4 [shape = 'u8[65536]{0}', space=vmem, size = 0x10000, scoped, tag = 'input window, operand 1, single buffered']
    #allocation5 [shape = 's32[1]{0}', space=sflag, size = 0x4, scoped, tag = 'scoped memory for grad_loss.1']
    %7 = vsyncpa [#allocation3], 0
    %8 = vsyncpa [#allocation5], 0
    // Predicated region
    $region2: #{grad_loss.1} parent=1 // pred_check
      _
    $region3: #{grad_loss.1} parent=1 // pred_check_branch
      %10 = sbr.rel (0) target = $region5
    $region4: #{grad_loss.1} parent=1 // pred_region
      %s11 = sadd.s32 0, 0
      %s12 = smul.u32 8, %s11
      %s14 = ssub.s32 2048, 2048
      %15 = vsyncadd [#allocation3], %s14
      %s16 = smul.addr %s12, 2
      %s17 = smul.addr %s16, 128
      %s18 = scalar_lea.hbm %s0, %s17
      %s19 = sshll.u32 [#allocation2], 4
      %s20 = int_to_ptr.vmem [resolvable:$true] %s19
      %25 = dma.hbm_to_vmem [thread:$0]  %s18, 2048, %s20, [#allocation3], 128, 128, 8
    $region5: #{grad_loss.1} parent=1 // pred_fallthru
      _
    // Predicated region
    $region6: #{grad_loss.1} parent=1 // pred_check
      _
    $region7: #{grad_loss.1} parent=1 // pred_check_branch
      %27 = sbr.rel (0) target = $region9
    $region8: #{grad_loss.1} parent=1 // pred_region
      %s28 = sadd.s32 0, 0
      %s29 = smul.u32 8, %s28
      %s31 = ssub.s32 2048, 2048
      %32 = vsyncadd [#allocation5], %s31
      %s33 = smul.addr %s29, 2
      %s34 = smul.addr %s33, 128
      %s35 = scalar_lea.hbm %s1, %s34
      %s36 = sshll.u32 [#allocation4], 4
      %s37 = int_to_ptr.vmem [resolvable:$true] %s36
      %42 = dma.hbm_to_vmem [thread:$0]  %s35, 2048, %s37, [#allocation5], 128, 128, 8
    $region9: #{grad_loss.1} parent=1 // pred_fallthru
      _
    // Predicated region
    $region10: #{grad_loss.1} parent=1 // pred_check
      _
    $region11: #{grad_loss.1} parent=1 // pred_check_branch
      %44 = sbr.rel (0) target = $region13
    $region12: #{grad_loss.1} parent=1 // pred_region
      %45 = dma.done [#allocation3], 2048
    $region13: #{grad_loss.1} parent=1 // pred_fallthru
      _
    // Predicated region
    $region14: #{grad_loss.1} parent=1 // pred_check
      _
    $region15: #{grad_loss.1} parent=1 // pred_check_branch
      %47 = sbr.rel (0) target = $region17
    $region16: #{grad_loss.1} parent=1 // pred_region
      %48 = dma.done [#allocation5], 2048
    $region17: #{grad_loss.1} parent=1 // pred_fallthru
      _
    %s49 = sadd.s32 0, 0
    %s50 = smul.u32 8, %s49
    %s51 = sadd.s32 0, 0
    %s52 = smul.u32 8, %s51
    %p53 = scmp.eq.s32.totalorder 0, 0
    // Predicated region
    $region18: #{grad_loss.1} parent=1 // pred_check
      %p54 = pneg %p53
    $region19: #{grad_loss.1} parent=1 // pred_check_branch
      %56 = sbr.rel (%p54) target = $region21
    $region20: #{grad_loss.1} parent=1 // pred_region
      %57 = vst [vmem:[%s2] sm:$0xff] 0.0
    $region21: #{grad_loss.1} parent=1 // pred_fallthru
      _
    %v58 = vld [vmem:[#allocation2] sm:$0xff]
    %v59 = vld [vmem:[#allocation2 + $0x8] sm:$0xff]
    %v60 = vld [vmem:[#allocation2 + $0x10] sm:$0xff]
    %v61 = vld [vmem:[#allocation2 + $0x18] sm:$0xff]
    %v62 = vld [vmem:[#allocation2 + $0x20] sm:$0xff]
    %v63 = vld [vmem:[#allocation2 + $0x28] sm:$0xff]
    %v64 = vld [vmem:[#allocation2 + $0x30] sm:$0xff]
    %v65 = vld [vmem:[#allocation2 + $0x38] sm:$0xff]
    %v66 = vld [vmem:[#allocation2 + $0x40] sm:$0xff]
    %v67 = vld [vmem:[#allocation2 + $0x48] sm:$0xff]
    %v68 = vld [vmem:[#allocation2 + $0x50] sm:$0xff]
    %v69 = vld [vmem:[#allocation2 + $0x58] sm:$0xff]
    %v70 = vld [vmem:[#allocation2 + $0x60] sm:$0xff]
    %v71 = vld [vmem:[#allocation2 + $0x68] sm:$0xff]
    %v72 = vld [vmem:[#allocation2 + $0x70] sm:$0xff]
    %v73 = vld [vmem:[#allocation2 + $0x78] sm:$0xff]
    %v74 = vld [vmem:[#allocation4] sm:$0xff]
    %v75 = vld [vmem:[#allocation4 + $0x8] sm:$0xff]
    %v76 = vld [vmem:[#allocation4 + $0x10] sm:$0xff]
    %v77 = vld [vmem:[#allocation4 + $0x18] sm:$0xff]
    %v78 = vld [vmem:[#allocation4 + $0x20] sm:$0xff]
    %v79 = vld [vmem:[#allocation4 + $0x28] sm:$0xff]
    %v80 = vld [vmem:[#allocation4 + $0x30] sm:$0xff]
    %v81 = vld [vmem:[#allocation4 + $0x38] sm:$0xff]
    %v82 = vld [vmem:[#allocation4 + $0x40] sm:$0xff]
    %v83 = vld [vmem:[#allocation4 + $0x48] sm:$0xff]
    %v84 = vld [vmem:[#allocation4 + $0x50] sm:$0xff]
    %v85 = vld [vmem:[#allocation4 + $0x58] sm:$0xff]
    %v86 = vld [vmem:[#allocation4 + $0x60] sm:$0xff]
    %v87 = vld [vmem:[#allocation4 + $0x68] sm:$0xff]
    %v88 = vld [vmem:[#allocation4 + $0x70] sm:$0xff]
    %v89 = vld [vmem:[#allocation4 + $0x78] sm:$0xff]
    %v90 = vsub.f32 %v58, %v74
    %v91 = vsub.f32 %v59, %v75
    %v92 = vsub.f32 %v60, %v76
    %v93 = vsub.f32 %v61, %v77
    %v94 = vsub.f32 %v62, %v78
    %v95 = vsub.f32 %v63, %v79
    %v96 = vsub.f32 %v64, %v80
    %v97 = vsub.f32 %v65, %v81
    %v98 = vsub.f32 %v66, %v82
    %v99 = vsub.f32 %v67, %v83
    %v100 = vsub.f32 %v68, %v84
    %v101 = vsub.f32 %v69, %v85
    %v102 = vsub.f32 %v70, %v86
    %v103 = vsub.f32 %v71, %v87
    %v104 = vsub.f32 %v72, %v88
    %v105 = vsub.f32 %v73, %v89
    %v106 = vmul.f32 %v90, -4.0
    %v107 = vmul.f32 %v91, -4.0
    %v108 = vmul.f32 %v92, -4.0
    %v109 = vmul.f32 %v93, -4.0
    %v110 = vmul.f32 %v94, -4.0
    %v111 = vmul.f32 %v95, -4.0
    %v112 = vmul.f32 %v96, -4.0
    %v113 = vmul.f32 %v97, -4.0
    %v114 = vmul.f32 %v98, -4.0
    %v115 = vmul.f32 %v99, -4.0
    %v116 = vmul.f32 %v100, -4.0
    %v117 = vmul.f32 %v101, -4.0
    %v118 = vmul.f32 %v102, -4.0
    %v119 = vmul.f32 %v103, -4.0
    %v120 = vmul.f32 %v104, -4.0
    %v121 = vmul.f32 %v105, -4.0
    %vm138 = vcmask 1040384
    %v139 = vrot.slane %v90, 7
    %v140 = vrot.slane %v91, 7
    %v141 = vsel %vm138, %v139, %v140
    %v142 = vrot.slane %v92, 7
    %v143 = vrot.slane %v93, 7
    %v144 = vsel %vm138, %v142, %v143
    %v145 = vrot.slane %v94, 7
    %v146 = vrot.slane %v95, 7
    %v147 = vsel %vm138, %v145, %v146
    %v148 = vrot.slane %v96, 7
    %v149 = vrot.slane %v97, 7
    %v150 = vsel %vm138, %v148, %v149
    %v151 = vrot.slane %v98, 7
    %v152 = vrot.slane %v99, 7
    %v153 = vsel %vm138, %v151, %v152
    %v154 = vrot.slane %v100, 7
    %v155 = vrot.slane %v101, 7
    %v156 = vsel %vm138, %v154, %v155
    %v157 = vrot.slane %v102, 7
    %v158 = vrot.slane %v103, 7
    %v159 = vsel %vm138, %v157, %v158
    %v160 = vrot.slane %v104, 7
    %v161 = vrot.slane %v105, 7
    %v162 = vsel %vm138, %v160, %v161
    %v179 = vsel %vm138, 0.0, %v139
    %v180 = vsel %vm138, 0.0, %v142
    %v181 = vsel %vm138, 0.0, %v145
    %v182 = vsel %vm138, 0.0, %v148
    %v183 = vsel %vm138, 0.0, %v151
    %v184 = vsel %vm138, 0.0, %v154
    %v185 = vsel %vm138, 0.0, %v157
    %v186 = vsel %vm138, 0.0, %v160
    %v187 = vadd.f32 %v106, %v179
    %v188 = vadd.f32 %v107, %v141
    %v189 = vadd.f32 %v108, %v180
    %v190 = vadd.f32 %v109, %v144
    %v191 = vadd.f32 %v110, %v181
    %v192 = vadd.f32 %v111, %v147
    %v193 = vadd.f32 %v112, %v182
    %v194 = vadd.f32 %v113, %v150
    %v195 = vadd.f32 %v114, %v183
    %v196 = vadd.f32 %v115, %v153
    %v197 = vadd.f32 %v116, %v184
    %v198 = vadd.f32 %v117, %v156
    %v199 = vadd.f32 %v118, %v185
    %v200 = vadd.f32 %v119, %v159
    %v201 = vadd.f32 %v120, %v186
    %v202 = vadd.f32 %v121, %v162
    %vm203 = vcmask 1046528
    %v204 = vrot.slane %v90, 1
    %v205 = vrot.slane %v91, 1
    %v206 = vsel %vm203, %v204, %v205
    %v207 = vrot.slane %v92, 1
    %v208 = vrot.slane %v93, 1
    %v209 = vsel %vm203, %v207, %v208
    %v210 = vrot.slane %v94, 1
    %v211 = vrot.slane %v95, 1
    %v212 = vsel %vm203, %v210, %v211
    %v213 = vrot.slane %v96, 1
    %v214 = vrot.slane %v97, 1
    %v215 = vsel %vm203, %v213, %v214
    %v216 = vrot.slane %v98, 1
    %v217 = vrot.slane %v99, 1
    %v218 = vsel %vm203, %v216, %v217
    %v219 = vrot.slane %v100, 1
    %v220 = vrot.slane %v101, 1
    %v221 = vsel %vm203, %v219, %v220
    %v222 = vrot.slane %v102, 1
    %v223 = vrot.slane %v103, 1
    %v224 = vsel %vm203, %v222, %v223
    %v225 = vrot.slane %v104, 1
    %v226 = vrot.slane %v105, 1
    %v227 = vsel %vm203, %v225, %v226
    %v244 = vsel %vm203, %v205, 0.0
    %v245 = vsel %vm203, %v208, 0.0
    %v246 = vsel %vm203, %v211, 0.0
    %v247 = vsel %vm203, %v214, 0.0
    %v248 = vsel %vm203, %v217, 0.0
    %v249 = vsel %vm203, %v220, 0.0
    %v250 = vsel %vm203, %v223, 0.0
    %v251 = vsel %vm203, %v226, 0.0
    %v252 = vadd.f32 %v187, %v206
    %v253 = vadd.f32 %v188, %v244
    %v254 = vadd.f32 %v189, %v209
    %v255 = vadd.f32 %v190, %v245
    %v256 = vadd.f32 %v191, %v212
    %v257 = vadd.f32 %v192, %v246
    %v258 = vadd.f32 %v193, %v215
    %v259 = vadd.f32 %v194, %v247
    %v260 = vadd.f32 %v195, %v218
    %v261 = vadd.f32 %v196, %v248
    %v262 = vadd.f32 %v197, %v221
    %v263 = vadd.f32 %v198, %v249
    %v264 = vadd.f32 %v199, %v224
    %v265 = vadd.f32 %v200, %v250
    %v266 = vadd.f32 %v201, %v227
    %v267 = vadd.f32 %v202, %v251
    %268 = vrot.lane.b32.xlu0 %v90, 1
    %v269 = vpop.permute.xlu0 %268
    %270 = vrot.lane.b32.xlu0 %v91, 1
    %v271 = vpop.permute.xlu0 %270
    %272 = vrot.lane.b32.xlu0 %v92, 1
    %v273 = vpop.permute.xlu0 %272
    %274 = vrot.lane.b32.xlu0 %v93, 1
    %v275 = vpop.permute.xlu0 %274
    %276 = vrot.lane.b32.xlu0 %v94, 1
    %v277 = vpop.permute.xlu0 %276
    %278 = vrot.lane.b32.xlu0 %v95, 1
    %v279 = vpop.permute.xlu0 %278
    %280 = vrot.lane.b32.xlu0 %v96, 1
    %v281 = vpop.permute.xlu0 %280
    %282 = vrot.lane.b32.xlu0 %v97, 1
    %v283 = vpop.permute.xlu0 %282
    %284 = vrot.lane.b32.xlu0 %v98, 1
    %v285 = vpop.permute.xlu0 %284
    %286 = vrot.lane.b32.xlu0 %v99, 1
    %v287 = vpop.permute.xlu0 %286
    %288 = vrot.lane.b32.xlu0 %v100, 1
    %v289 = vpop.permute.xlu0 %288
    %290 = vrot.lane.b32.xlu0 %v101, 1
    %v291 = vpop.permute.xlu0 %290
    %292 = vrot.lane.b32.xlu0 %v102, 1
    %v293 = vpop.permute.xlu0 %292
    %294 = vrot.lane.b32.xlu0 %v103, 1
    %v295 = vpop.permute.xlu0 %294
    %296 = vrot.lane.b32.xlu0 %v104, 1
    %v297 = vpop.permute.xlu0 %296
    %298 = vrot.lane.b32.xlu0 %v105, 1
    %v299 = vpop.permute.xlu0 %298
    %vm316 = vcmask 7168
    %v317 = vsel %vm316, 0.0, %v269
    %v318 = vsel %vm316, 0.0, %v271
    %v319 = vsel %vm316, 0.0, %v273
    %v320 = vsel %vm316, 0.0, %v275
    %v321 = vsel %vm316, 0.0, %v277
    %v322 = vsel %vm316, 0.0, %v279
    %v323 = vsel %vm316, 0.0, %v281
    %v324 = vsel %vm316, 0.0, %v283
    %v325 = vsel %vm316, 0.0, %v285
    %v326 = vsel %vm316, 0.0, %v287
    %v327 = vsel %vm316, 0.0, %v289
    %v328 = vsel %vm316, 0.0, %v291
    %v329 = vsel %vm316, 0.0, %v293
    %v330 = vsel %vm316, 0.0, %v295
    %v331 = vsel %vm316, 0.0, %v297
    %v332 = vsel %vm316, 0.0, %v299
    %v333 = vadd.f32 %v252, %v317
    %v334 = vadd.f32 %v253, %v318
    %v335 = vadd.f32 %v254, %v319
    %v336 = vadd.f32 %v255, %v320
    %v337 = vadd.f32 %v256, %v321
    %v338 = vadd.f32 %v257, %v322
    %v339 = vadd.f32 %v258, %v323
    %v340 = vadd.f32 %v259, %v324
    %v341 = vadd.f32 %v260, %v325
    %v342 = vadd.f32 %v261, %v326
    %v343 = vadd.f32 %v262, %v327
    %v344 = vadd.f32 %v263, %v328
    %v345 = vadd.f32 %v264, %v329
    %v346 = vadd.f32 %v265, %v330
    %v347 = vadd.f32 %v266, %v331
    %v348 = vadd.f32 %v267, %v332
    %349 = vrot.lane.b32.xlu0 %v90, 127
    %v350 = vpop.permute.xlu0 %349
    %351 = vrot.lane.b32.xlu0 %v91, 127
    %v352 = vpop.permute.xlu0 %351
    %353 = vrot.lane.b32.xlu0 %v92, 127
    %v354 = vpop.permute.xlu0 %353
    %355 = vrot.lane.b32.xlu0 %v93, 127
    %v356 = vpop.permute.xlu0 %355
    %357 = vrot.lane.b32.xlu0 %v94, 127
    %v358 = vpop.permute.xlu0 %357
    %359 = vrot.lane.b32.xlu0 %v95, 127
    %v360 = vpop.permute.xlu0 %359
    %361 = vrot.lane.b32.xlu0 %v96, 127
    %v362 = vpop.permute.xlu0 %361
    %363 = vrot.lane.b32.xlu0 %v97, 127
    %v364 = vpop.permute.xlu0 %363
    %365 = vrot.lane.b32.xlu0 %v98, 127
    %v366 = vpop.permute.xlu0 %365
    %367 = vrot.lane.b32.xlu0 %v99, 127
    %v368 = vpop.permute.xlu0 %367
    %369 = vrot.lane.b32.xlu0 %v100, 127
    %v370 = vpop.permute.xlu0 %369
    %371 = vrot.lane.b32.xlu0 %v101, 127
    %v372 = vpop.permute.xlu0 %371
    %373 = vrot.lane.b32.xlu0 %v102, 127
    %v374 = vpop.permute.xlu0 %373
    %375 = vrot.lane.b32.xlu0 %v103, 127
    %v376 = vpop.permute.xlu0 %375
    %377 = vrot.lane.b32.xlu0 %v104, 127
    %v378 = vpop.permute.xlu0 %377
    %379 = vrot.lane.b32.xlu0 %v105, 127
    %v380 = vpop.permute.xlu0 %379
    %vm397 = vcmask 121856
    %v398 = vsel %vm397, %v350, 0.0
    %v399 = vsel %vm397, %v352, 0.0
    %v400 = vsel %vm397, %v354, 0.0
    %v401 = vsel %vm397, %v356, 0.0
    %v402 = vsel %vm397, %v358, 0.0
    %v403 = vsel %vm397, %v360, 0.0
    %v404 = vsel %vm397, %v362, 0.0
    %v405 = vsel %vm397, %v364, 0.0
    %v406 = vsel %vm397, %v366, 0.0
    %v407 = vsel %vm397, %v368, 0.0
    %v408 = vsel %vm397, %v370, 0.0
    %v409 = vsel %vm397, %v372, 0.0
    %v410 = vsel %vm397, %v374, 0.0
    %v411 = vsel %vm397, %v376, 0.0
    %v412 = vsel %vm397, %v378, 0.0
    %v413 = vsel %vm397, %v380, 0.0
    %v414 = vadd.f32 %v333, %v398
    %v415 = vadd.f32 %v334, %v399
    %v416 = vadd.f32 %v335, %v400
    %v417 = vadd.f32 %v336, %v401
    %v418 = vadd.f32 %v337, %v402
    %v419 = vadd.f32 %v338, %v403
    %v420 = vadd.f32 %v339, %v404
    %v421 = vadd.f32 %v340, %v405
    %v422 = vadd.f32 %v341, %v406
    %v423 = vadd.f32 %v342, %v407
    %v424 = vadd.f32 %v343, %v408
    %v425 = vadd.f32 %v344, %v409
    %v426 = vadd.f32 %v345, %v410
    %v427 = vadd.f32 %v346, %v411
    %v428 = vadd.f32 %v347, %v412
    %v429 = vadd.f32 %v348, %v413
    %v430 = vld [vmem:[%s2] sm:$0xff]
    %v431 = vmul.f32 %v414, %v414
    %v432 = vmul.f32 %v415, %v415
    %v433 = vmul.f32 %v416, %v416
    %v434 = vmul.f32 %v417, %v417
    %v435 = vmul.f32 %v418, %v418
    %v436 = vmul.f32 %v419, %v419
    %v437 = vmul.f32 %v420, %v420
    %v438 = vmul.f32 %v421, %v421
    %v439 = vmul.f32 %v422, %v422
    %v440 = vmul.f32 %v423, %v423
    %v441 = vmul.f32 %v424, %v424
    %v442 = vmul.f32 %v425, %v425
    %v443 = vmul.f32 %v426, %v426
    %v444 = vmul.f32 %v427, %v427
    %v445 = vmul.f32 %v428, %v428
    %v446 = vmul.f32 %v429, %v429
    %vm447 = vcmask 130048
    %v448 = vsel %vm447, %v431, 0.0
    %v449 = vsel %vm447, %v432, 0.0
    %v450 = vadd.f32 %v448, %v449
    %v451 = vsel %vm447, %v433, 0.0
    %v452 = vadd.f32 %v450, %v451
    %v453 = vsel %vm447, %v434, 0.0
    %v454 = vadd.f32 %v452, %v453
    %v455 = vsel %vm447, %v435, 0.0
    %v456 = vadd.f32 %v454, %v455
    %v457 = vsel %vm447, %v436, 0.0
    %v458 = vadd.f32 %v456, %v457
    %v459 = vsel %vm447, %v437, 0.0
    %v460 = vadd.f32 %v458, %v459
    %v461 = vsel %vm447, %v438, 0.0
    %v462 = vadd.f32 %v460, %v461
    %v463 = vsel %vm447, %v439, 0.0
    %v464 = vadd.f32 %v462, %v463
    %v465 = vsel %vm447, %v440, 0.0
    %v466 = vadd.f32 %v464, %v465
    %v467 = vsel %vm447, %v441, 0.0
    %v468 = vadd.f32 %v466, %v467
    %v469 = vsel %vm447, %v442, 0.0
    %v470 = vadd.f32 %v468, %v469
    %v471 = vsel %vm447, %v443, 0.0
    %v472 = vadd.f32 %v470, %v471
    %v473 = vsel %vm447, %v444, 0.0
    %v474 = vadd.f32 %v472, %v473
    %v475 = vsel %vm447, %v445, 0.0
    %v476 = vadd.f32 %v474, %v475
    %v477 = vsel %vm447, %v446, 0.0
    %v478 = vadd.f32 %v476, %v477
    %479 = vadd.xlane.f32.xlu0 %v478
    %v480 = vpop.xlane.xlu0 %479
    %v481 = vrot.slane %v480, 4
    %v482 = vadd.f32 %v480, %v481
    %v483 = vrot.slane %v482, 2
    %v484 = vadd.f32 %v482, %v483
    %v485 = vrot.slane %v484, 1
    %v486 = vadd.f32 %v484, %v485
    %s487 = vtos %v486
    %v488 = vstv %s487
    %v489 = vadd.f32 %v430, %v488
    %490 = vst [vmem:[%s2] sm:$0xff] %v489
    // Predicated region
    $region22: #{grad_loss.1} parent=1 // pred_check
      _
    $region23: #{grad_loss.1} parent=1 // pred_check_branch
      %492 = sbr.rel (0) target = $region25
    $region24: #{grad_loss.1} parent=1 // pred_region
      _
    $region25: #{grad_loss.1} parent=1 // pred_fallthru
      _
    // Predicated region
    $region26: #{grad_loss.1} parent=1 // pred_check
      _
    $region27: #{grad_loss.1} parent=1 // pred_check_branch
      %494 = sbr.rel (0) target = $region29
    $region28: #{grad_loss.1} parent=1 // pred_region
      _
    $region29: #{grad_loss.1} parent=1 // pred_fallthru
      _
    %495 = vsyncpa [#allocation3], 1
    %496 = vsyncpa [#allocation5], 1

</llo_original>
